<compile_context>
chip_gen: v6e
topology: v6e:2x2x1
jax: 0.10.0
libtpu: 0.0.40
codegen_flags: <defaults>
</compile_context>

<pallas_src>
import functools

import jax
import jax.numpy as jnp
from jax.experimental import pallas as pl
from jax.experimental.pallas import tpu as pltpu

HIDDEN = 100       # logical hidden width of the PyTorch module
HIDDEN_PAD = 128   # lane-dense padded hidden width used inside the kernel


def _round_up(n, m):
    return ((n + m - 1) // m) * m


def encoder_kernel(x_ref, w1_ref, b1_ref, wh_ref, bh_ref, eps_ref, out_ref):
    mm_dtype = w1_ref.dtype            # matmul-input dtype (f32 or bf16)
    half = eps_ref.shape[-1]           # padded latent width (multiple of 128)

    x = x_ref[...].astype(mm_dtype)

    # Linear(in, 128pad) + ReLU.  MXU with f32 accumulation; bias / ReLU on VPU in f32.
    h1 = jnp.dot(x, w1_ref[...], preferred_element_type=jnp.float32) + b1_ref[...]
    h1 = jnp.maximum(h1, 0.0)

    # Folded (Linear2 @ heads): one matmul producing [mu | log_sigma], each
    # occupying its own 128-lane (vreg-aligned) half.
    head = jnp.dot(h1.astype(mm_dtype), wh_ref[...],
                   preferred_element_type=jnp.float32) + bh_ref[...]
    mu = head[:, :half]          # vreg-boundary slice
    log_sigma = head[:, half:]   # vreg-boundary slice

    # Reparameterization: z = mu + exp(log_sigma) * eps (EUP exp + VPU fma).
    # Padded lanes: log_sigma==0, eps==0, mu==0 -> z==0 (no inf/nan).
    z = mu + jnp.exp(log_sigma) * eps_ref[...]

    # Lane-dense packed output slab [z | mu | log_sigma]; both stores are at
    # 128-lane (vreg) boundaries -> unmasked vst, single writeback stream.
    out_ref[:, :half] = z.astype(out_ref.dtype)
    out_ref[:, half:] = head.astype(out_ref.dtype)


def pack_params(params, matmul_dtype=jnp.bfloat16):
    """One-time layout plumbing.

    - pad hidden 100 -> 128 (exact: padded w1 columns are zero, ReLU(0)=0),
    - fold the activation-free second Linear into the two heads
      (exact up to f32 rounding: there is no nonlinearity between them),
    - lay the fused head out 2*128 lanes wide so mu / log_sigma each own a
      vreg-aligned 128-lane half (zero-padded lanes beyond latent_dim).
    Biases stay f32 regardless of the matmul-input dtype.
    """
    hidden = params["w1"].shape[1]
    latent = params["wmu"].shape[1]
    pad_h = HIDDEN_PAD - hidden
    half = _round_up(latent, 128)
    pad_l = half - latent

    w1 = jnp.pad(params["w1"], ((0, 0), (0, pad_h))).astype(matmul_dtype)
    b1 = jnp.pad(params["b1"], ((0, 0), (0, pad_h))).astype(jnp.float32)

    w2p = jnp.pad(params["w2"], ((0, pad_h), (0, 0)))          # (128, output_dim) f32
    wmu_f = w2p @ params["wmu"]                                # (128, latent)
    wls_f = w2p @ params["wls"]                                # (128, latent)
    bmu_f = params["b2"] @ params["wmu"] + params["bmu"]       # (1, latent)
    bls_f = params["b2"] @ params["wls"] + params["bls"]       # (1, latent)

    wh = jnp.concatenate(
        [jnp.pad(wmu_f, ((0, 0), (0, pad_l))),
         jnp.pad(wls_f, ((0, 0), (0, pad_l)))], axis=1).astype(matmul_dtype)
    bh = jnp.concatenate(
        [jnp.pad(bmu_f, ((0, 0), (0, pad_l))),
         jnp.pad(bls_f, ((0, 0), (0, pad_l)))], axis=1).astype(jnp.float32)

    return dict(w1=w1, b1=b1, wh=wh, bh=bh)


@functools.partial(jax.jit, static_argnames=("block_b",))
def encoder_forward(x, packed, eps, *, block_b=4096):
    """x: (B, input_dim) f32, eps: (B, latent) f32. Returns (z, mu, log_sigma)."""
    B, input_dim = x.shape
    latent = eps.shape[-1]
    half = packed["wh"].shape[-1] // 2     # padded latent width (multiple of 128)

    # ---- batch tiling -------------------------------------------------------
    # Large tiles amortize the ~0.35 us/step overhead; >=2 balanced (even)
    # grid steps when there is enough work so v7x's 2nd TensorCore is used.
    B8 = _round_up(B, 8)
    n_steps = -(-B8 // block_b)                 # ceil div
    if n_steps == 1 and B8 >= 256:
        n_steps = 2                             # give v7x's 2nd core work
    if n_steps > 1 and (n_steps % 2) == 1:
        n_steps += 1                            # even step count -> balanced cores
    bm = _round_up(-(-B8 // n_steps), 8)
    grid_b = -(-B8 // bm)
    B_pad = grid_b * bm

    if B_pad != B:
        x = jnp.pad(x, ((0, B_pad - B), (0, 0)))
    # eps zero-padded to 128 lanes so the fma / load are lane-dense.
    eps_p = jnp.pad(eps, ((0, B_pad - B), (0, half - latent)))

    const = lambda i: (0, 0)   # weights/biases: same block every step (VMEM-resident)
    operands = (x, packed["w1"], packed["b1"], packed["wh"], packed["bh"], eps_p)

    flops = 2 * B_pad * (input_dim * HIDDEN_PAD + HIDDEN_PAD * 2 * half)
    bytes_accessed = (sum(int(a.size) * a.dtype.itemsize for a in operands)
                      + B_pad * 3 * half * 4)

    out = pl.pallas_call(
        encoder_kernel,
        out_shape=jax.ShapeDtypeStruct((B_pad, 3 * half), jnp.float32),
        grid=(grid_b,),
        in_specs=[
            pl.BlockSpec((bm, input_dim), lambda i: (i, 0)),        # x
            pl.BlockSpec((input_dim, HIDDEN_PAD), const),           # w1 (padded)
            pl.BlockSpec((1, HIDDEN_PAD), const),                   # b1 (padded)
            pl.BlockSpec((HIDDEN_PAD, 2 * half), const),            # folded [wmu|wls]
            pl.BlockSpec((1, 2 * half), const),                     # folded [bmu|bls]
            pl.BlockSpec((bm, half), lambda i: (i, 0)),             # eps (padded)
        ],
        out_specs=pl.BlockSpec((bm, 3 * half), lambda i: (i, 0)),
        compiler_params=pltpu.CompilerParams(
            dimension_semantics=("parallel",),
            vmem_limit_bytes=32 * 1024 * 1024),
        cost_estimate=pl.CostEstimate(
            flops=flops,
            transcendentals=B_pad * half,
            bytes_accessed=bytes_accessed),
    )(*operands)

    out = out[:B]
    z = out[:, :latent]
    mu = out[:, half:half + latent]
    log_sigma = out[:, 2 * half:2 * half + latent]
    return z, mu, log_sigma


def init_params(key, input_dim, latent_dim, output_dim, hidden=HIDDEN):
    """Deterministic synthetic init (PyTorch-like uniform(-1/sqrt(fan_in), .))."""
    ks = jax.random.split(key, 8)

    def lin(kw, kb, fan_in, fan_out):
        bound = 1.0 / jnp.sqrt(float(fan_in))
        w = jax.random.uniform(kw, (fan_in, fan_out), jnp.float32, -bound, bound)
        b = jax.random.uniform(kb, (1, fan_out), jnp.float32, -bound, bound)
        return w, b

    w1, b1 = lin(ks[0], ks[1], input_dim, hidden)
    w2, b2 = lin(ks[2], ks[3], hidden, output_dim)
    wmu, bmu = lin(ks[4], ks[5], output_dim, latent_dim)
    wls, bls = lin(ks[6], ks[7], output_dim, latent_dim)
    return dict(w1=w1, b1=b1, w2=w2, b2=b2, wmu=wmu, bmu=bmu, wls=wls, bls=bls)


if __name__ == "__main__":
    # Small shapes consistent with the module's forward: x is (batch, input_dim).
    B, INPUT_DIM, OUTPUT_DIM, LATENT_DIM = 8, 32, 32, 16

    key = jax.random.PRNGKey(0)
    k_x, k_p, k_eps = jax.random.split(key, 3)

    x = jax.random.normal(k_x, (B, INPUT_DIM), dtype=jnp.float32)
    params = init_params(k_p, INPUT_DIM, LATENT_DIM, OUTPUT_DIM)
    # eps ~ N(0,1), deterministic from the seed (mirrors torch.randn_like).
    eps = jax.random.normal(k_eps, (B, LATENT_DIM), dtype=jnp.float32)

    # Plain-JAX reference against the ORIGINAL (unpadded, unfused) parameters.
    h_ref = jnp.maximum(x @ params["w1"] + params["b1"], 0.0) @ params["w2"] + params["b2"]
    mu_ref = h_ref @ params["wmu"] + params["bmu"]
    ls_ref = h_ref @ params["wls"] + params["bls"]
    z_ref = mu_ref + jnp.exp(ls_ref) * eps

    # f32 matmul-input path: parity with the module (fold adds only f32 rounding).
    z, mu, log_sigma = encoder_forward(x, pack_params(params, jnp.float32), eps)
    jax.block_until_ready((z, mu, log_sigma))
    assert jnp.allclose(mu, mu_ref, atol=1e-4, rtol=1e-4)
    assert jnp.allclose(log_sigma, ls_ref, atol=1e-4, rtol=1e-4)
    assert jnp.allclose(z, z_ref, atol=1e-4, rtol=1e-4)

    # bf16 matmul-input path (default in pack_params; v6e/v7x MXU rate, half the
    # weight/x matmul bytes); accumulation and all elementwise math remain f32.
    zb, mub, lsb = encoder_forward(x, pack_params(params, jnp.bfloat16), eps)
    jax.block_until_ready((zb, mub, lsb))
    assert jnp.allclose(mub, mu_ref, atol=1e-1, rtol=1e-1)
    assert jnp.allclose(lsb, ls_ref, atol=1e-1, rtol=1e-1)
    assert jnp.allclose(zb, z_ref, atol=1e-1, rtol=1e-1)

    print("KERNEL_OK")
</pallas_src>

<mosaic_0001>
module attributes {stable_mosaic.version = 11 : i64} {
  func.func @encoder_kernel(%arg0: i32, %arg1: memref<8x32xf32, #tpu.memory_space<vmem>>, %arg2: memref<32x128xf32, #tpu.memory_space<vmem>>, %arg3: memref<1x128xf32, #tpu.memory_space<vmem>>, %arg4: memref<128x256xf32, #tpu.memory_space<vmem>>, %arg5: memref<1x256xf32, #tpu.memory_space<vmem>>, %arg6: memref<8x128xf32, #tpu.memory_space<vmem>>, %arg7: memref<8x384xf32, #tpu.memory_space<vmem>>) attributes {dimension_semantics = [#tpu.dimension_semantics<parallel>], iteration_bounds = array<i64: 1>, scalar_prefetch = 0 : i64, scratch_operands = 0 : i64, tpu.core_type = #tpu.core_type<tc>, window_params = [{transform_indices = @transform_0, window_bounds = array<i64: 8, 32>}, {pipeline_mode = #tpu.pipeline_mode<synchronous>, transform_indices = @transform_1, window_bounds = array<i64: 32, 128>}, {pipeline_mode = #tpu.pipeline_mode<synchronous>, transform_indices = @transform_2, window_bounds = array<i64: 1, 128>}, {pipeline_mode = #tpu.pipeline_mode<synchronous>, transform_indices = @transform_3, window_bounds = array<i64: 128, 256>}, {pipeline_mode = #tpu.pipeline_mode<synchronous>, transform_indices = @transform_4, window_bounds = array<i64: 1, 256>}, {transform_indices = @transform_5, window_bounds = array<i64: 8, 128>}, {transform_indices = @transform_6, window_bounds = array<i64: 8, 384>}]} {
    %c0 = arith.constant 0 : index
    %c0_0 = arith.constant 0 : index
    %0 = vector.load %arg1[%c0, %c0_0] : memref<8x32xf32, #tpu.memory_space<vmem>>, vector<8x32xf32>
    %c0_1 = arith.constant 0 : index
    %c0_2 = arith.constant 0 : index
    %1 = vector.load %arg2[%c0_1, %c0_2] : memref<32x128xf32, #tpu.memory_space<vmem>>, vector<32x128xf32>
    %cst = arith.constant dense<0.000000e+00> : vector<8x128xf32>
    %2 = tpu.matmul %0, %1, %cst {dimension_numbers = #tpu.dot_dimension_numbers<[1], [0], [0], [1], [0, 0, 1, 1], [], []>} : vector<8x32xf32>, vector<32x128xf32>, vector<8x128xf32> -> vector<8x128xf32>
    %c0_3 = arith.constant 0 : index
    %c0_4 = arith.constant 0 : index
    %3 = vector.load %arg3[%c0_3, %c0_4] : memref<1x128xf32, #tpu.memory_space<vmem>>, vector<1x128xf32>
    %4 = vector.broadcast %3 : vector<1x128xf32> to vector<8x128xf32>
    %5 = arith.addf %2, %4 : vector<8x128xf32>
    %cst_5 = arith.constant 0.000000e+00 : f32
    %6 = vector.broadcast %cst_5 : f32 to vector<8x128xf32>
    %7 = arith.maximumf %5, %6 : vector<8x128xf32>
    %c0_6 = arith.constant 0 : index
    %c0_7 = arith.constant 0 : index
    %8 = vector.load %arg4[%c0_6, %c0_7] : memref<128x256xf32, #tpu.memory_space<vmem>>, vector<128x256xf32>
    %cst_8 = arith.constant dense<0.000000e+00> : vector<8x256xf32>
    %9 = tpu.matmul %7, %8, %cst_8 {dimension_numbers = #tpu.dot_dimension_numbers<[1], [0], [0], [1], [0, 0, 1, 1], [], []>} : vector<8x128xf32>, vector<128x256xf32>, vector<8x256xf32> -> vector<8x256xf32>
    %c0_9 = arith.constant 0 : index
    %c0_10 = arith.constant 0 : index
    %10 = vector.load %arg5[%c0_9, %c0_10] : memref<1x256xf32, #tpu.memory_space<vmem>>, vector<1x256xf32>
    %11 = vector.broadcast %10 : vector<1x256xf32> to vector<8x256xf32>
    %12 = arith.addf %9, %11 : vector<8x256xf32>
    %13 = vector.extract_strided_slice %12 {offsets = [0, 0], sizes = [8, 128], strides = [1, 1]} : vector<8x256xf32> to vector<8x128xf32>
    %14 = vector.extract_strided_slice %12 {offsets = [0, 128], sizes = [8, 128], strides = [1, 1]} : vector<8x256xf32> to vector<8x128xf32>
    %15 = math.exp %14 : vector<8x128xf32>
    %c0_11 = arith.constant 0 : index
    %c0_12 = arith.constant 0 : index
    %16 = vector.load %arg6[%c0_11, %c0_12] : memref<8x128xf32, #tpu.memory_space<vmem>>, vector<8x128xf32>
    %17 = arith.mulf %15, %16 : vector<8x128xf32>
    %18 = arith.addf %13, %17 : vector<8x128xf32>
    %c0_13 = arith.constant 0 : index
    %c0_14 = arith.constant 0 : index
    %19 = vector.load %arg7[%c0_13, %c0_14] : memref<8x384xf32, #tpu.memory_space<vmem>>, vector<8x128xf32>
    tpu.vector_store %arg7[%c0_13, %c0_14], %18 {strides = array<i32>} : memref<8x384xf32, #tpu.memory_space<vmem>>, vector<8x128xf32>,
    %c0_15 = arith.constant 0 : index
    %c128 = arith.constant 128 : index
    %20 = vector.load %arg7[%c0_15, %c128] : memref<8x384xf32, #tpu.memory_space<vmem>>, vector<8x256xf32>
    tpu.vector_store %arg7[%c0_15, %c128], %12 {strides = array<i32>} : memref<8x384xf32, #tpu.memory_space<vmem>>, vector<8x256xf32>,
    return
  }
  func.func @transform_0(%arg0: i32) -> (i32, i32) {
    %c0_i32 = arith.constant 0 : i32
    %c0_i32_0 = arith.constant 0 : i32
    return %arg0, %c0_i32 : i32, i32
  }
  func.func @transform_1(%arg0: i32) -> (i32, i32) {
    %c0_i32 = arith.constant 0 : i32
    %c0_i32_0 = arith.constant 0 : i32
    %c0_i32_1 = arith.constant 0 : i32
    return %c0_i32, %c0_i32_0 : i32, i32
  }
  func.func @transform_2(%arg0: i32) -> (i32, i32) {
    %c0_i32 = arith.constant 0 : i32
    %c0_i32_0 = arith.constant 0 : i32
    %c0_i32_1 = arith.constant 0 : i32
    return %c0_i32, %c0_i32_0 : i32, i32
  }
  func.func @transform_3(%arg0: i32) -> (i32, i32) {
    %c0_i32 = arith.constant 0 : i32
    %c0_i32_0 = arith.constant 0 : i32
    %c0_i32_1 = arith.constant 0 : i32
    return %c0_i32, %c0_i32_0 : i32, i32
  }
  func.func @transform_4(%arg0: i32) -> (i32, i32) {
    %c0_i32 = arith.constant 0 : i32
    %c0_i32_0 = arith.constant 0 : i32
    %c0_i32_1 = arith.constant 0 : i32
    return %c0_i32, %c0_i32_0 : i32, i32
  }
  func.func @transform_5(%arg0: i32) -> (i32, i32) {
    %c0_i32 = arith.constant 0 : i32
    %c0_i32_0 = arith.constant 0 : i32
    return %arg0, %c0_i32 : i32, i32
  }
  func.func @transform_6(%arg0: i32) -> (i32, i32) {
    %c0_i32 = arith.constant 0 : i32
    %c0_i32_0 = arith.constant 0 : i32
    return %arg0, %c0_i32 : i32, i32
  }
}

</mosaic_0001>

<llo_original>
// kernel: encoder_forward.1
$region0: #{encoder_forward.1}
  #allocation0 [shape = 'u32[]', space=smem, size = 0x4, offset = 0x4, fixed_abs, tag = 'smem constant byte address 0x4 - core index']
  #allocation1 [shape = 'u32[144,128]{1,0:T(1,128)}', space=vmem, size = 0x12000, scoped, tag = 'internal scratch']
  %s0 = inlined_call_operand.vmem [shape: f32[8,32], index: 0, kind: input, shape index: {}]
  %s1 = inlined_call_operand.hbm [shape: f32[32,128], index: 1, kind: input, shape index: {}]
  %s2 = inlined_call_operand.vmem [shape: f32[1,128], index: 2, kind: input, shape index: {}]
  %s3 = inlined_call_operand.hbm [shape: f32[128,256], index: 3, kind: input, shape index: {}]
  %s4 = inlined_call_operand.vmem [shape: f32[1,256], index: 4, kind: input, shape index: {}]
  %s5 = inlined_call_operand.vmem [shape: f32[8,128], index: 5, kind: input, shape index: {}]
  %s6 = inlined_call_operand.vmem [shape: f32[8,384], index: 6, kind: output, shape index: {}]
  %s7 = sld [smem:[#allocation0]]
  $region42: #{encoder_forward.1} parent=0
    _
  %s9 = ssub.s32 1, %s7
  %s10 = scalar_select 0, %s9, %s7
  $region1: #{encoder_forward.1} parent=0
    #allocation2 [shape = 'u8[16384]{0}', space=vmem, size = 0x4000, scoped, tag = 'input window, operand 1, single buffered']
    #allocation3 [shape = 's32[1]{0}', space=sflag, size = 0x4, scoped, tag = 'scoped memory for encoder_forward.1']
    #allocation4 [shape = 'u8[131072]{0}', space=vmem, size = 0x20000, scoped, tag = 'input window, operand 3, single buffered']
    #allocation5 [shape = 's32[1]{0}', space=sflag, size = 0x4, scoped, tag = 'scoped memory for encoder_forward.1']
    %11 = vsyncpa [#allocation3], 0
    %12 = vsyncpa [#allocation5], 0
    // Predicated region
    $region2: #{encoder_forward.1} parent=1 // pred_check
      _
    $region3: #{encoder_forward.1} parent=1 // pred_check_branch
      %14 = sbr.rel (0) target = $region5
    $region4: #{encoder_forward.1} parent=1 // pred_region
      _
    $region5: #{encoder_forward.1} parent=1 // pred_fallthru
      _
    // Predicated region
    $region6: #{encoder_forward.1} parent=1 // pred_check
      _
    $region7: #{encoder_forward.1} parent=1 // pred_check_branch
      %16 = sbr.rel (0) target = $region9
    $region8: #{encoder_forward.1} parent=1 // pred_region
      %s18 = ssub.s32 512, 512
      %19 = vsyncadd [#allocation3], %s18
      %s20 = sshll.u32 [#allocation2], 4
      %s21 = int_to_ptr.vmem [resolvable:$true] %s20
      %26 = dma.hbm_to_vmem [thread:$0]  %s1, 512, %s21, [#allocation3], 128, 128, 8
    $region9: #{encoder_forward.1} parent=1 // pred_fallthru
      _
    // Predicated region
    $region10: #{encoder_forward.1} parent=1 // pred_check
      _
    $region11: #{encoder_forward.1} parent=1 // pred_check_branch
      %28 = sbr.rel (0) target = $region13
    $region12: #{encoder_forward.1} parent=1 // pred_region
      _
    $region13: #{encoder_forward.1} parent=1 // pred_fallthru
      _
    // Predicated region
    $region14: #{encoder_forward.1} parent=1 // pred_check
      _
    $region15: #{encoder_forward.1} parent=1 // pred_check_branch
      %30 = sbr.rel (0) target = $region17
    $region16: #{encoder_forward.1} parent=1 // pred_region
      %s32 = ssub.s32 4096, 4096
      %33 = vsyncadd [#allocation5], %s32
      %s34 = sshll.u32 [#allocation4], 4
      %s35 = int_to_ptr.vmem [resolvable:$true] %s34
      %40 = dma.hbm_to_vmem [thread:$0]  %s3, 4096, %s35, [#allocation5], 256, 256, 16
    $region17: #{encoder_forward.1} parent=1 // pred_fallthru
      _
    // Predicated region
    $region18: #{encoder_forward.1} parent=1 // pred_check
      _
    $region19: #{encoder_forward.1} parent=1 // pred_check_branch
      %42 = sbr.rel (0) target = $region21
    $region20: #{encoder_forward.1} parent=1 // pred_region
      _
    $region21: #{encoder_forward.1} parent=1 // pred_fallthru
      _
    // Predicated region
    $region22: #{encoder_forward.1} parent=1 // pred_check
      _
    $region23: #{encoder_forward.1} parent=1 // pred_check_branch
      %44 = sbr.rel (0) target = $region25
    $region24: #{encoder_forward.1} parent=1 // pred_region
      _
    $region25: #{encoder_forward.1} parent=1 // pred_fallthru
      _
    // Predicated region
    $region26: #{encoder_forward.1} parent=1 // pred_check
      _
    $region27: #{encoder_forward.1} parent=1 // pred_check_branch
      %46 = sbr.rel (0) target = $region29
    $region28: #{encoder_forward.1} parent=1 // pred_region
      %47 = dma.done [#allocation3], 512
    $region29: #{encoder_forward.1} parent=1 // pred_fallthru
      _
    // Predicated region
    $region30: #{encoder_forward.1} parent=1 // pred_check
      _
    $region31: #{encoder_forward.1} parent=1 // pred_check_branch
      %49 = sbr.rel (0) target = $region33
    $region32: #{encoder_forward.1} parent=1 // pred_region
      %50 = dma.done [#allocation5], 4096
    $region33: #{encoder_forward.1} parent=1 // pred_fallthru
      _
    %v51 = vld [vmem:[%s0] sm:$0xff]
    %v52 = vld [vmem:[#allocation2] sm:$0xff]
    %v53 = vld [vmem:[#allocation2 + $0x8] sm:$0xff]
    %v54 = vld [vmem:[#allocation2 + $0x10] sm:$0xff]
    %v55 = vld [vmem:[#allocation2 + $0x18] sm:$0xff]
    %v56 = vld [vmem:[%s2] sm:$0x1]
    %v58 = vlaneseq
    %v59 = vshrl.u32 %v58, 7
    %v60 = vsub.s32 0, %v59
    %v61 = vrot.slane %v56, %v60
    %vm63 = vcmask 261120
    %v65 = vsel %vm63, %v51, 0
    %67 = vmatprep.subr.mxu0 0.0
    %68 = vmatpush1.msra.mxu0 0.0
    %69 = vmatprep.subr.mxu0 0.0
    %70 = vmatpush1.msra.mxu0 0.0
    %71 = vmatprep.subr.mxu0 0.0
    %72 = vmatpush1.msra.mxu0 0.0
    %73 = vmatprep.subr.mxu0 0.0
    %74 = vmatpush1.msra.mxu0 0.0
    %75 = vmatprep.subr.mxu0 0.0
    %76 = vmatpush1.msra.mxu0 0.0
    %77 = vmatprep.subr.mxu0 0.0
    %78 = vmatpush1.msra.mxu0 0.0
    %79 = vmatprep.subr.mxu0 0.0
    %80 = vmatpush1.msra.mxu0 0.0
    %81 = vmatprep.subr.mxu0 0.0
    %82 = vmatpush1.msra.mxu0 0.0
    %83 = vmatprep.subr.mxu0 0.0
    %84 = vmatpush1.msra.mxu0 0.0
    %85 = vmatprep.subr.mxu0 0.0
    %86 = vmatpush1.msra.mxu0 0.0
    %87 = vmatprep.subr.mxu0 0.0
    %88 = vmatpush1.msra.mxu0 0.0
    %89 = vmatprep.subr.mxu0 0.0
    %90 = vmatpush1.msra.mxu0 0.0
    %91 = vmatprep.subr.mxu0 0.0
    %92 = vmatpush1.msra.mxu0 %v55
    %93 = vmatprep.subr.mxu0 0.0
    %94 = vmatpush1.msra.mxu0 %v54
    %95 = vmatprep.subr.mxu0 0.0
    %96 = vmatpush1.msra.mxu0 %v53
    %97 = vmatprep.subr.mxu0 0.0
    %98 = vmatpush1.msra.mxu0 %v52
    %99 = vmatprep.subr.mxu0 0.0
    %100 = vmatpush2.msra.mxu0 0.0
    %101 = vmatprep.subr.mxu0 0.0
    %102 = vmatpush2.msra.mxu0 0.0
    %103 = vmatprep.subr.mxu0 0.0
    %104 = vmatpush2.msra.mxu0 0.0
    %105 = vmatprep.subr.mxu0 0.0
    %106 = vmatpush2.msra.mxu0 0.0
    %107 = vmatprep.subr.mxu0 0.0
    %108 = vmatpush2.msra.mxu0 0.0
    %109 = vmatprep.subr.mxu0 0.0
    %110 = vmatpush2.msra.mxu0 0.0
    %111 = vmatprep.subr.mxu0 0.0
    %112 = vmatpush2.msra.mxu0 0.0
    %113 = vmatprep.subr.mxu0 0.0
    %114 = vmatpush2.msra.mxu0 0.0
    %115 = vmatprep.subr.mxu0 0.0
    %116 = vmatpush2.msra.mxu0 0.0
    %117 = vmatprep.subr.mxu0 0.0
    %118 = vmatpush2.msra.mxu0 0.0
    %119 = vmatprep.subr.mxu0 0.0
    %120 = vmatpush2.msra.mxu0 0.0
    %121 = vmatprep.subr.mxu0 0.0
    %122 = vmatpush2.msra.mxu0 0.0
    %123 = vmatprep.subr.mxu0 0.0
    %124 = vmatpush2.msra.mxu0 0.0
    %125 = vmatprep.subr.mxu0 0.0
    %126 = vmatpush2.msra.mxu0 0.0
    %127 = vmatprep.subr.mxu0 0.0
    %128 = vmatpush2.msra.mxu0 0.0
    %129 = vmatprep.subr.mxu0 0.0
    %130 = vmatpush2.msra.mxu0 0.0
    %131 = vmatprep.mubr.f32.mxu0 0.0
    %132 = vmatmul.mubr.f32.gmra.mxu0 %v65
    %v133 = vpop.f32.mrf.mxu0
    %v134 = vadd.f32 %v61, %v133
    %v135 = vpop.f32.mrf.mxu0
    %136 = vdwg.mxu0
    %v137 = vmax.f32 %v134, 0.0
    %v138 = vld [vmem:[#allocation4] sm:$0xff]
    %v139 = vld [vmem:[#allocation4 + $0x8] sm:$0xff]
    %v140 = vld [vmem:[#allocation4 + $0x10] sm:$0xff]
    %v141 = vld [vmem:[#allocation4 + $0x18] sm:$0xff]
    %v142 = vld [vmem:[#allocation4 + $0x20] sm:$0xff]
    %v143 = vld [vmem:[#allocation4 + $0x28] sm:$0xff]
    %v144 = vld [vmem:[#allocation4 + $0x30] sm:$0xff]
    %v145 = vld [vmem:[#allocation4 + $0x38] sm:$0xff]
    %v146 = vld [vmem:[#allocation4 + $0x40] sm:$0xff]
    %v147 = vld [vmem:[#allocation4 + $0x48] sm:$0xff]
    %v148 = vld [vmem:[#allocation4 + $0x50] sm:$0xff]
    %v149 = vld [vmem:[#allocation4 + $0x58] sm:$0xff]
    %v150 = vld [vmem:[#allocation4 + $0x60] sm:$0xff]
    %v151 = vld [vmem:[#allocation4 + $0x68] sm:$0xff]
    %v152 = vld [vmem:[#allocation4 + $0x70] sm:$0xff]
    %v153 = vld [vmem:[#allocation4 + $0x78] sm:$0xff]
    %v154 = vld [vmem:[#allocation4 + $0x80] sm:$0xff]
    %v155 = vld [vmem:[#allocation4 + $0x88] sm:$0xff]
    %v156 = vld [vmem:[#allocation4 + $0x90] sm:$0xff]
    %v157 = vld [vmem:[#allocation4 + $0x98] sm:$0xff]
    %v158 = vld [vmem:[#allocation4 + $0xa0] sm:$0xff]
    %v159 = vld [vmem:[#allocation4 + $0xa8] sm:$0xff]
    %v160 = vld [vmem:[#allocation4 + $0xb0] sm:$0xff]
    %v161 = vld [vmem:[#allocation4 + $0xb8] sm:$0xff]
    %v162 = vld [vmem:[#allocation4 + $0xc0] sm:$0xff]
    %v163 = vld [vmem:[#allocation4 + $0xc8] sm:$0xff]
    %v164 = vld [vmem:[#allocation4 + $0xd0] sm:$0xff]
    %v165 = vld [vmem:[#allocation4 + $0xd8] sm:$0xff]
    %v166 = vld [vmem:[#allocation4 + $0xe0] sm:$0xff]
    %v167 = vld [vmem:[#allocation4 + $0xe8] sm:$0xff]
    %v168 = vld [vmem:[#allocation4 + $0xf0] sm:$0xff]
    %v169 = vld [vmem:[#allocation4 + $0xf8] sm:$0xff]
    %v170 = vld [vmem:[%s4] sm:$0x3]
    %v172 = vlaneseq
    %v173 = vshrl.u32 %v172, 7
    %v174 = vsub.s32 0, %v173
    %v175 = vrot.slane %v170, %v174
    %v176 = vlaneseq
    %v177 = vshrl.u32 %v176, 7
    %v178 = vsub.s32 1, %v177
    %v179 = vrot.slane %v170, %v178
    %182 = vmatprep.subr.mxu0 %v169
    %183 = vmatpush1.msra.mxu0 %v168
    %184 = vmatprep.subr.mxu0 %v167
    %185 = vmatpush1.msra.mxu0 %v166
    %186 = vmatprep.subr.mxu0 %v165
    %187 = vmatpush1.msra.mxu0 %v164
    %188 = vmatprep.subr.mxu0 %v163
    %189 = vmatpush1.msra.mxu0 %v162
    %190 = vmatprep.subr.mxu0 %v161
    %191 = vmatpush1.msra.mxu0 %v160
    %192 = vmatprep.subr.mxu0 %v159
    %193 = vmatpush1.msra.mxu0 %v158
    %194 = vmatprep.subr.mxu0 %v157
    %195 = vmatpush1.msra.mxu0 %v156
    %196 = vmatprep.subr.mxu0 %v155
    %197 = vmatpush1.msra.mxu0 %v154
    %198 = vmatprep.subr.mxu0 %v153
    %199 = vmatpush1.msra.mxu0 %v152
    %200 = vmatprep.subr.mxu0 %v151
    %201 = vmatpush1.msra.mxu0 %v150
    %202 = vmatprep.subr.mxu0 %v149
    %203 = vmatpush1.msra.mxu0 %v148
    %204 = vmatprep.subr.mxu0 %v147
    %205 = vmatpush1.msra.mxu0 %v146
    %206 = vmatprep.subr.mxu0 %v145
    %207 = vmatpush1.msra.mxu0 %v144
    %208 = vmatprep.subr.mxu0 %v143
    %209 = vmatpush1.msra.mxu0 %v142
    %210 = vmatprep.subr.mxu0 %v141
    %211 = vmatpush1.msra.mxu0 %v140
    %212 = vmatprep.subr.mxu0 %v139
    %213 = vmatpush1.msra.mxu0 %v138
    %214 = vmatprep.subr.mxu0 0.0
    %215 = vmatpush2.msra.mxu0 0.0
    %216 = vmatprep.subr.mxu0 0.0
    %217 = vmatpush2.msra.mxu0 0.0
    %218 = vmatprep.subr.mxu0 0.0
    %219 = vmatpush2.msra.mxu0 0.0
    %220 = vmatprep.subr.mxu0 0.0
    %221 = vmatpush2.msra.mxu0 0.0
    %222 = vmatprep.subr.mxu0 0.0
    %223 = vmatpush2.msra.mxu0 0.0
    %224 = vmatprep.subr.mxu0 0.0
    %225 = vmatpush2.msra.mxu0 0.0
    %226 = vmatprep.subr.mxu0 0.0
    %227 = vmatpush2.msra.mxu0 0.0
    %228 = vmatprep.subr.mxu0 0.0
    %229 = vmatpush2.msra.mxu0 0.0
    %230 = vmatprep.subr.mxu0 0.0
    %231 = vmatpush2.msra.mxu0 0.0
    %232 = vmatprep.subr.mxu0 0.0
    %233 = vmatpush2.msra.mxu0 0.0
    %234 = vmatprep.subr.mxu0 0.0
    %235 = vmatpush2.msra.mxu0 0.0
    %236 = vmatprep.subr.mxu0 0.0
    %237 = vmatpush2.msra.mxu0 0.0
    %238 = vmatprep.subr.mxu0 0.0
    %239 = vmatpush2.msra.mxu0 0.0
    %240 = vmatprep.subr.mxu0 0.0
    %241 = vmatpush2.msra.mxu0 0.0
    %242 = vmatprep.subr.mxu0 0.0
    %243 = vmatpush2.msra.mxu0 0.0
    %244 = vmatprep.subr.mxu0 0.0
    %245 = vmatpush2.msra.mxu0 0.0
    %246 = vmatprep.mubr.f32.mxu0 0.0
    %247 = vmatmul.mubr.f32.gmra.mxu0 %v137
    %v248 = vpop.f32.mrf.mxu0
    %v249 = vadd.f32 %v175, %v248
    %v250 = vpop.f32.mrf.mxu0
    %v251 = vadd.f32 %v179, %v250
    %252 = vdwg.mxu0
    %v253 = vmul.f32 %v251, 1.442695
    %v254 = vpow.pop %v253
    %v255 = vld [vmem:[%s5] sm:$0xff]
    %v256 = vmul.f32 %v254, %v255
    %v257 = vadd.f32 %v249, %v256
    %258 = vst [vmem:[%s6] sm:$0xff] %v257
    %259 = vst [vmem:[%s6 + $0x8] sm:$0xff] %v249
    %260 = vst [vmem:[%s6 + $0x10] sm:$0xff] %v251
    // Predicated region
    $region34: #{encoder_forward.1} parent=1 // pred_check
      _
    $region35: #{encoder_forward.1} parent=1 // pred_check_branch
      %262 = sbr.rel (0) target = $region37
    $region36: #{encoder_forward.1} parent=1 // pred_region
      _
    $region37: #{encoder_forward.1} parent=1 // pred_fallthru
      _
    // Predicated region
    $region38: #{encoder_forward.1} parent=1 // pred_check
      _
    $region39: #{encoder_forward.1} parent=1 // pred_check_branch
      %264 = sbr.rel (0) target = $region41
    $region40: #{encoder_forward.1} parent=1 // pred_region
      _
    $region41: #{encoder_forward.1} parent=1 // pred_fallthru
      _
    %265 = vsyncpa [#allocation3], 1
    %266 = vsyncpa [#allocation5], 1

</llo_original>
